<compile_context>
chip_gen: v7x
topology: tpu7x:2x2x1
jax: 0.10.0
libtpu: 0.0.40
codegen_flags: <defaults>
</compile_context>

<pallas_src>
import functools
import math

import jax
import jax.numpy as jnp
from jax.experimental import pallas as pl
from jax.experimental.pallas import tpu as pltpu


def _next_action_kernel(x_ref, wt_ref, b_ref, o_ref):
    # x_ref:  (TM, H)      — one M tile of the input
    # wt_ref: (H, A_pad)   — pre-transposed weight, VMEM-resident across tiles
    # b_ref:  (1, A_pad)   — bias (padded cols = -1e30), VMEM-resident
    # o_ref:  (TM, A_pad)  — lane-dense output tile
    logits = jnp.dot(
        x_ref[...], wt_ref[...], preferred_element_type=jnp.float32
    )
    logits = logits + b_ref[...].astype(jnp.float32)

    # Numerically stable LogSoftmax over the last (lane) dim, in f32.
    m = jnp.max(logits, axis=-1, keepdims=True)
    shifted = logits - m
    lse = jnp.log(jnp.sum(jnp.exp(shifted), axis=-1, keepdims=True))
    o_ref[...] = (shifted - lse).astype(o_ref.dtype)


@functools.partial(jax.jit, static_argnames=("block_m",))
def next_action_prediction(x, weight, bias, *, block_m=512):
    """x: (..., hidden), weight: (actionspace, hidden), bias: (actionspace,)."""
    *lead, hidden = x.shape
    actionspace = weight.shape[0]
    m = math.prod(lead) if lead else 1

    # Lane-dense output: pad actionspace up to a multiple of 128.
    a_pad = ((actionspace + 127) // 128) * 128

    x2d = x.reshape(m, hidden)

    # One-time transpose + pad in the wrapper (fused by XLA), not per grid step.
    wt = weight.T  # (hidden, actionspace)
    if a_pad != actionspace:
        wt = jnp.pad(wt, ((0, 0), (0, a_pad - actionspace)))
        b = jnp.pad(bias, (0, a_pad - actionspace), constant_values=-1e30)
    else:
        b = bias
    b2d = b.reshape(1, a_pad)

    # Tile M; a single block is used when M fits (block == full dim is legal).
    # block_m=512 keeps double-buffered tiles well under the scoped-VMEM
    # defaults on every generation (including v7x's smaller 64 MiB VMEM).
    tm = m if m <= block_m else block_m
    grid = (pl.cdiv(m, tm),)

    out2d = pl.pallas_call(
        _next_action_kernel,
        out_shape=jax.ShapeDtypeStruct((m, a_pad), x.dtype),
        grid_spec=pl.GridSpec(
            grid=grid,
            in_specs=[
                pl.BlockSpec((tm, hidden), lambda i: (i, 0)),
                pl.BlockSpec((hidden, a_pad), lambda i: (0, 0)),
                pl.BlockSpec((1, a_pad), lambda i: (0, 0)),
            ],
            out_specs=pl.BlockSpec((tm, a_pad), lambda i: (i, 0)),
        ),
        compiler_params=pltpu.CompilerParams(
            # M tiles are independent -> parallel (uses both TCs on v7x).
            dimension_semantics=("parallel",),
        ),
    )(x2d, wt, b2d)

    # Drop the pad columns and restore leading dims.
    out2d = out2d[:, :actionspace]
    return out2d.reshape(*lead, actionspace)


def _reference(x, weight, bias):
    logits = jnp.einsum("...h,ah->...a", x, weight) + bias
    return jax.nn.log_softmax(logits, axis=-1)


if __name__ == "__main__":
    # Small shapes consistent with the module: BERT-style (batch, seq, hidden).
    batch, seq, hidden, actionspace = 2, 8, 32, 16

    key = jax.random.PRNGKey(0)
    kx, kw, kb = jax.random.split(key, 3)

    x = jax.random.normal(kx, (batch, seq, hidden), dtype=jnp.float32)

    # Deterministic nn.Linear-style init: U(-1/sqrt(hidden), 1/sqrt(hidden)).
    bound = 1.0 / (hidden ** 0.5)
    weight = jax.random.uniform(
        kw, (actionspace, hidden), dtype=jnp.float32, minval=-bound, maxval=bound
    )
    bias = jax.random.uniform(
        kb, (actionspace,), dtype=jnp.float32, minval=-bound, maxval=bound
    )

    out = next_action_prediction(x, weight, bias)
    out = jax.block_until_ready(out)

    ref = _reference(x, weight, bias)
    assert out.shape == (batch, seq, actionspace)
    assert jnp.allclose(out, ref, atol=1e-5, rtol=1e-5), "mismatch vs reference"

    print("KERNEL_OK")
</pallas_src>

<mosaic_0001>
module attributes {stable_mosaic.version = 11 : i64} {
  func.func @_next_action_kernel(%arg0: i32, %arg1: memref<16x32xf32, #tpu.memory_space<vmem>>, %arg2: memref<32x128xf32, #tpu.memory_space<vmem>>, %arg3: memref<1x128xf32, #tpu.memory_space<vmem>>, %arg4: memref<16x128xf32, #tpu.memory_space<vmem>>) attributes {dimension_semantics = [#tpu.dimension_semantics<parallel>], iteration_bounds = array<i64: 1>, scalar_prefetch = 0 : i64, scratch_operands = 0 : i64, tpu.core_type = #tpu.core_type<tc>, window_params = [{transform_indices = @transform_0, window_bounds = array<i64: 16, 32>}, {pipeline_mode = #tpu.pipeline_mode<synchronous>, transform_indices = @transform_1, window_bounds = array<i64: 32, 128>}, {pipeline_mode = #tpu.pipeline_mode<synchronous>, transform_indices = @transform_2, window_bounds = array<i64: 1, 128>}, {transform_indices = @transform_3, window_bounds = array<i64: 16, 128>}]} {
    %c0 = arith.constant 0 : index
    %c0_0 = arith.constant 0 : index
    %0 = vector.load %arg1[%c0, %c0_0] : memref<16x32xf32, #tpu.memory_space<vmem>>, vector<16x32xf32>
    %c0_1 = arith.constant 0 : index
    %c0_2 = arith.constant 0 : index
    %1 = vector.load %arg2[%c0_1, %c0_2] : memref<32x128xf32, #tpu.memory_space<vmem>>, vector<32x128xf32>
    %cst = arith.constant dense<0.000000e+00> : vector<16x128xf32>
    %2 = tpu.matmul %0, %1, %cst {dimension_numbers = #tpu.dot_dimension_numbers<[1], [0], [0], [1], [0, 0, 1, 1], [], []>} : vector<16x32xf32>, vector<32x128xf32>, vector<16x128xf32> -> vector<16x128xf32>
    %c0_3 = arith.constant 0 : index
    %c0_4 = arith.constant 0 : index
    %3 = vector.load %arg3[%c0_3, %c0_4] : memref<1x128xf32, #tpu.memory_space<vmem>>, vector<1x128xf32>
    %4 = vector.broadcast %3 : vector<1x128xf32> to vector<16x128xf32>
    %5 = arith.addf %2, %4 : vector<16x128xf32>
    %cst_5 = arith.constant dense<0xFF800000> : vector<16xf32>
    %6 = vector.multi_reduction <maximumf>, %5, %cst_5 [1] : vector<16x128xf32> to vector<16xf32>
    %7 = vector.shape_cast %6 : vector<16xf32> to vector<16x1xf32>
    %8 = vector.broadcast %7 : vector<16x1xf32> to vector<16x128xf32>
    %9 = arith.subf %5, %8 : vector<16x128xf32>
    %10 = math.exp %9 : vector<16x128xf32>
    %cst_6 = arith.constant dense<0.000000e+00> : vector<16xf32>
    %11 = vector.multi_reduction <add>, %10, %cst_6 [1] : vector<16x128xf32> to vector<16xf32>
    %12 = vector.shape_cast %11 : vector<16xf32> to vector<16x1xf32>
    %13 = math.log %12 : vector<16x1xf32>
    %14 = vector.broadcast %13 : vector<16x1xf32> to vector<16x128xf32>
    %15 = arith.subf %9, %14 : vector<16x128xf32>
    %c0_7 = arith.constant 0 : index
    %c0_8 = arith.constant 0 : index
    %16 = vector.load %arg4[%c0_7, %c0_8] : memref<16x128xf32, #tpu.memory_space<vmem>>, vector<16x128xf32>
    tpu.vector_store %arg4[%c0_7, %c0_8], %15 {strides = array<i32>} : memref<16x128xf32, #tpu.memory_space<vmem>>, vector<16x128xf32>,
    return
  }
  func.func @transform_0(%arg0: i32) -> (i32, i32) {
    %c0_i32 = arith.constant 0 : i32
    %c0_i32_0 = arith.constant 0 : i32
    return %arg0, %c0_i32 : i32, i32
  }
  func.func @transform_1(%arg0: i32) -> (i32, i32) {
    %c0_i32 = arith.constant 0 : i32
    %c0_i32_0 = arith.constant 0 : i32
    %c0_i32_1 = arith.constant 0 : i32
    return %c0_i32, %c0_i32_0 : i32, i32
  }
  func.func @transform_2(%arg0: i32) -> (i32, i32) {
    %c0_i32 = arith.constant 0 : i32
    %c0_i32_0 = arith.constant 0 : i32
    %c0_i32_1 = arith.constant 0 : i32
    return %c0_i32, %c0_i32_0 : i32, i32
  }
  func.func @transform_3(%arg0: i32) -> (i32, i32) {
    %c0_i32 = arith.constant 0 : i32
    %c0_i32_0 = arith.constant 0 : i32
    return %arg0, %c0_i32 : i32, i32
  }
}

</mosaic_0001>

<llo_original>
// kernel: next_action_prediction.1
$region0: #{next_action_prediction.1}
  #allocation0 [shape = 'u32[]', space=smem, size = 0x4, offset = 0x4, fixed_abs, tag = 'smem constant byte address 0x4 - core index']
  #allocation1 [shape = 'u32[144,128]{1,0:T(1,128)}', space=vmem, size = 0x12000, scoped, tag = 'internal scratch']
  %s0 = inlined_call_operand.vmem [shape: f32[16,32], index: 0, kind: input, shape index: {}]
  %s1 = inlined_call_operand.vmem [shape: f32[32,128], index: 1, kind: input, shape index: {}]
  %s2 = inlined_call_operand.vmem [shape: f32[1,128], index: 2, kind: input, shape index: {}]
  %s3 = inlined_call_operand.vmem [shape: f32[16,128], index: 3, kind: output, shape index: {}]
  %s4 = sld [smem:[#allocation0]]
  $region22: #{next_action_prediction.1} parent=0
    _
  %s6 = ssub.s32 1, %s4
  %s7 = scalar_select 0, %s6, %s4
  // Predicated region
  $region2: #{next_action_prediction.1} parent=0 // pred_check
    _
  $region3: #{next_action_prediction.1} parent=0 // pred_check_branch
    %9 = sbr.rel (0) target = $region5
  $region4: #{next_action_prediction.1} parent=0 // pred_region
    _
  $region5: #{next_action_prediction.1} parent=0 // pred_fallthru
    _
  // Predicated region
  $region6: #{next_action_prediction.1} parent=0 // pred_check
    _
  $region7: #{next_action_prediction.1} parent=0 // pred_check_branch
    %11 = sbr.rel (0) target = $region9
  $region8: #{next_action_prediction.1} parent=0 // pred_region
    _
  $region9: #{next_action_prediction.1} parent=0 // pred_fallthru
    _
  // Predicated region
  $region10: #{next_action_prediction.1} parent=0 // pred_check
    _
  $region11: #{next_action_prediction.1} parent=0 // pred_check_branch
    %13 = sbr.rel (0) target = $region13
  $region12: #{next_action_prediction.1} parent=0 // pred_region
    _
  $region13: #{next_action_prediction.1} parent=0 // pred_fallthru
    _
  %v14 = vld [vmem:[%s0] sm:$0xff]
  %v15 = vld [vmem:[%s0 + $0x8] sm:$0xff]
  %v16 = vld [vmem:[%s1] sm:$0xff]
  %v17 = vld [vmem:[%s1 + $0x8] sm:$0xff]
  %v18 = vld [vmem:[%s1 + $0x10] sm:$0xff]
  %v19 = vld [vmem:[%s1 + $0x18] sm:$0xff]
  %v20 = vld [vmem:[%s2] sm:$0x1]
  %v22 = vlaneseq
  %v23 = vshrl.u32 %v22, 7
  %v24 = vsub.s32 0, %v23
  %v25 = vrot.slane %v20, %v24
  %vm27 = vcmask 261120
  %v29 = vsel %vm27, %v14, 0
  %v32 = vsel %vm27, %v15, 0
  %34 = vmatprep.subr.mxu0 0.0
  %35 = vmatpush1.msra.mxu0 %v16
  %36 = vmatprep.subr.mxu0 0.0
  %37 = vmatpush1.msra.mxu0 %v17
  %38 = vmatprep.subr.mxu0 0.0
  %39 = vmatpush1.msra.mxu0 %v18
  %40 = vmatprep.subr.mxu0 0.0
  %41 = vmatpush1.msra.mxu0 %v19
  %42 = vmatprep.subr.mxu0 0.0
  %43 = vmatpush1.msra.mxu0 0.0
  %44 = vmatprep.subr.mxu0 0.0
  %45 = vmatpush1.msra.mxu0 0.0
  %46 = vmatprep.subr.mxu0 0.0
  %47 = vmatpush1.msra.mxu0 0.0
  %48 = vmatprep.subr.mxu0 0.0
  %49 = vmatpush1.msra.mxu0 0.0
  %50 = vmatprep.subr.mxu0 0.0
  %51 = vmatpush1.msra.mxu0 0.0
  %52 = vmatprep.subr.mxu0 0.0
  %53 = vmatpush1.msra.mxu0 0.0
  %54 = vmatprep.subr.mxu0 0.0
  %55 = vmatpush1.msra.mxu0 0.0
  %56 = vmatprep.subr.mxu0 0.0
  %57 = vmatpush1.msra.mxu0 0.0
  %58 = vmatprep.subr.mxu0 0.0
  %59 = vmatpush1.msra.mxu0 0.0
  %60 = vmatprep.subr.mxu0 0.0
  %61 = vmatpush1.msra.mxu0 0.0
  %62 = vmatprep.subr.mxu0 0.0
  %63 = vmatpush1.msra.mxu0 0.0
  %64 = vmatprep.subr.mxu0 0.0
  %65 = vmatpush1.msra.mxu0 0.0
  %66 = vmatprep.subr.mxu0 0.0
  %67 = vmatpush1.msra.mxu0 0.0
  %68 = vmatprep.subr.mxu0 0.0
  %69 = vmatpush1.msra.mxu0 0.0
  %70 = vmatprep.subr.mxu0 0.0
  %71 = vmatpush1.msra.mxu0 0.0
  %72 = vmatprep.subr.mxu0 0.0
  %73 = vmatpush1.msra.mxu0 0.0
  %74 = vmatprep.subr.mxu0 0.0
  %75 = vmatpush1.msra.mxu0 0.0
  %76 = vmatprep.subr.mxu0 0.0
  %77 = vmatpush1.msra.mxu0 0.0
  %78 = vmatprep.subr.mxu0 0.0
  %79 = vmatpush1.msra.mxu0 0.0
  %80 = vmatprep.subr.mxu0 0.0
  %81 = vmatpush1.msra.mxu0 0.0
  %82 = vmatprep.subr.mxu0 0.0
  %83 = vmatpush1.msra.mxu0 0.0
  %84 = vmatprep.subr.mxu0 0.0
  %85 = vmatpush1.msra.mxu0 0.0
  %86 = vmatprep.subr.mxu0 0.0
  %87 = vmatpush1.msra.mxu0 0.0
  %88 = vmatprep.subr.mxu0 0.0
  %89 = vmatpush1.msra.mxu0 0.0
  %90 = vmatprep.subr.mxu0 0.0
  %91 = vmatpush1.msra.mxu0 0.0
  %92 = vmatprep.subr.mxu0 0.0
  %93 = vmatpush1.msra.mxu0 0.0
  %94 = vmatprep.subr.mxu0 0.0
  %95 = vmatpush1.msra.mxu0 0.0
  %96 = vmatprep.subr.mxu0 0.0
  %97 = vmatpush1.msra.mxu0 0.0
  %98 = vmatprep.mubr.f32.mxu0 0.0
  %99 = vmatmul.mubr.f32.gmra.mrb[0].mxu0 %v29
  %v100 = vpop.f32.mrb[0].mxu0
  %v101 = vadd.f32 %v25, %v100
  %v102 = vpop.f32.mrb[0].mxu0
  %103 = vmatprep.mubr.f32.mxu0 0.0
  %104 = vmatmul.mubr.f32.gmra.mrb[0].mxu0 %v32
  %v105 = vpop.f32.mrb[0].mxu0
  %v106 = vadd.f32 %v25, %v105
  %v107 = vpop.f32.mrb[0].mxu0
  %108 = vdwg.mxu0
  %109 = vmax.xlane.f32.xlu0 %v101
  %v110 = vpop.xlane.xlu0 %109
  %111 = vmax.xlane.f32.xlu0 %v106
  %v112 = vpop.xlane.xlu0 %111
  %v113 = vsub.f32 %v101, %v110
  %v114 = vsub.f32 %v106, %v112
  %v115 = vmul.f32 %v113, 1.442695
  %v116 = vpow.pop %v115
  %v117 = vmul.f32 %v114, 1.442695
  %v118 = vpow.pop %v117
  %119 = vadd.xlane.f32.xlu0 %v116
  %v120 = vpop.xlane.xlu0 %119
  %121 = vadd.xlane.f32.xlu0 %v118
  %v122 = vpop.xlane.xlu0 %121
  %v123 = vlog2.pop %v120
  %v124 = vmul.f32 %v123, 0.6931472
  %v125 = vlog2.pop %v122
  %v126 = vmul.f32 %v125, 0.6931472
  %v127 = vsub.f32 %v113, %v124
  %v128 = vsub.f32 %v114, %v126
  %129 = vst [vmem:[%s3] sm:$0xff] %v127
  %130 = vst [vmem:[%s3 + $0x8] sm:$0xff] %v128
  // Predicated region
  $region14: #{next_action_prediction.1} parent=0 // pred_check
    _
  $region15: #{next_action_prediction.1} parent=0 // pred_check_branch
    %132 = sbr.rel (0) target = $region17
  $region16: #{next_action_prediction.1} parent=0 // pred_region
    _
  $region17: #{next_action_prediction.1} parent=0 // pred_fallthru
    _
  // Predicated region
  $region18: #{next_action_prediction.1} parent=0 // pred_check
    _
  $region19: #{next_action_prediction.1} parent=0 // pred_check_branch
    %134 = sbr.rel (0) target = $region21
  $region20: #{next_action_prediction.1} parent=0 // pred_region
    _
  $region21: #{next_action_prediction.1} parent=0 // pred_fallthru
    _

</llo_original>
